<compile_context>
chip_gen: v7x
topology: tpu7x:2x2x1
jax: 0.10.0
libtpu: 0.0.40
codegen_flags: <defaults>
</compile_context>

<pallas_src>
import jax
import jax.numpy as jnp
from jax.experimental import pallas as pl
from jax.experimental.pallas import tpu as pltpu


def _linear_tanh_kernel(x_ref, wt_ref, b_ref, o_ref):
    # x_ref : (TB, K)  batch tile
    # wt_ref: (K, N)   pre-transposed weight
    # b_ref : (1, N)   bias
    # o_ref : (TB, N)  output tile
    y = jnp.dot(x_ref[...], wt_ref[...], preferred_element_type=jnp.float32)
    o_ref[...] = jnp.tanh(y + b_ref[...]).astype(o_ref.dtype)


def _round_up(v, m):
    return (v + m - 1) // m * m


def linear_tanh(x, W, b, *, block_b=2048):
    """y = tanh(x @ W.T + b), matching torch.nn.Linear(13, 3) + Tanh.

    x: (B, in_features)
    W: (out_features, in_features)   (torch nn.Linear weight layout)
    b: (out_features,)
    returns: (B, out_features)
    """
    B, K = x.shape
    N = W.shape[0]

    wt = W.T                      # (K, N) — tiny, one-time layout fix
    bias = b.reshape(1, N)        # (1, N)

    # Batch tile: multiple of 8 sublanes, capped so VMEM stays small even
    # double-buffered. Pad batch up to a whole number of tiles.
    TB = min(_round_up(max(B, 1), 8), block_b)
    Bp = _round_up(B, TB)
    if Bp != B:
        x = jnp.pad(x, ((0, Bp - B), (0, 0)))

    grid = (Bp // TB,)

    out = pl.pallas_call(
        _linear_tanh_kernel,
        out_shape=jax.ShapeDtypeStruct((Bp, N), x.dtype),
        grid=grid,
        in_specs=[
            # x tile: (TB, K) — second-last dim multiple of 8, last dim equals
            # the full array dim (13) -> legal block; contiguous HBM chunk.
            pl.BlockSpec((TB, K), lambda i: (i, 0)),
            # Weight / bias: full-array blocks, resident across the grid.
            pl.BlockSpec((K, N), lambda i: (0, 0)),
            pl.BlockSpec((1, N), lambda i: (0, 0)),
        ],
        out_specs=pl.BlockSpec((TB, N), lambda i: (i, 0)),
        compiler_params=pltpu.CompilerParams(
            dimension_semantics=("parallel",),
        ),
    )(x, wt, bias)

    # Drop batch padding.
    return out[:B]


if __name__ == "__main__":
    key = jax.random.PRNGKey(0)
    kx, kw, kb = jax.random.split(key, 3)

    in_features, out_features = 13, 3
    batch = 8

    # Deterministic params (mimic nn.Linear uniform(-1/sqrt(in), 1/sqrt(in)))
    bound = 1.0 / (in_features ** 0.5)
    W = jax.random.uniform(kw, (out_features, in_features), jnp.float32,
                           minval=-bound, maxval=bound)   # torch weight (out, in)
    b = jax.random.uniform(kb, (out_features,), jnp.float32,
                           minval=-bound, maxval=bound)

    x = jax.random.normal(kx, (batch, in_features), jnp.float32)

    y = linear_tanh(x, W, b)
    y = jax.block_until_ready(y)

    # Reference: tanh(x @ W.T + b), same as the PyTorch module.
    y_ref = jnp.tanh(x @ W.T + b)
    assert y.shape == (batch, out_features)
    assert jnp.allclose(y, y_ref, atol=1e-5, rtol=1e-5), "mismatch vs reference"

    print("KERNEL_OK")
</pallas_src>

<mosaic_0001>
module attributes {stable_mosaic.version = 11 : i64} {
  func.func @_linear_tanh_kernel(%arg0: i32, %arg1: memref<8x13xf32, #tpu.memory_space<vmem>>, %arg2: memref<13x3xf32, #tpu.memory_space<vmem>>, %arg3: memref<1x3xf32, #tpu.memory_space<vmem>>, %arg4: memref<8x3xf32, #tpu.memory_space<vmem>>) attributes {dimension_semantics = [#tpu.dimension_semantics<parallel>], iteration_bounds = array<i64: 1>, scalar_prefetch = 0 : i64, scratch_operands = 0 : i64, tpu.core_type = #tpu.core_type<tc>, window_params = [{transform_indices = @transform_0, window_bounds = array<i64: 8, 13>}, {pipeline_mode = #tpu.pipeline_mode<synchronous>, transform_indices = @transform_1, window_bounds = array<i64: 13, 3>}, {pipeline_mode = #tpu.pipeline_mode<synchronous>, transform_indices = @transform_2, window_bounds = array<i64: 1, 3>}, {transform_indices = @transform_3, window_bounds = array<i64: 8, 3>}]} {
    %c0 = arith.constant 0 : index
    %c0_0 = arith.constant 0 : index
    %0 = vector.load %arg1[%c0, %c0_0] : memref<8x13xf32, #tpu.memory_space<vmem>>, vector<8x13xf32>
    %c0_1 = arith.constant 0 : index
    %c0_2 = arith.constant 0 : index
    %1 = vector.load %arg2[%c0_1, %c0_2] : memref<13x3xf32, #tpu.memory_space<vmem>>, vector<13x3xf32>
    %cst = arith.constant dense<0.000000e+00> : vector<8x3xf32>
    %2 = tpu.matmul %0, %1, %cst {dimension_numbers = #tpu.dot_dimension_numbers<[1], [0], [0], [1], [0, 0, 1, 1], [], []>} : vector<8x13xf32>, vector<13x3xf32>, vector<8x3xf32> -> vector<8x3xf32>
    %c0_3 = arith.constant 0 : index
    %c0_4 = arith.constant 0 : index
    %3 = vector.load %arg3[%c0_3, %c0_4] : memref<1x3xf32, #tpu.memory_space<vmem>>, vector<1x3xf32>
    %4 = vector.broadcast %3 : vector<1x3xf32> to vector<8x3xf32>
    %5 = arith.addf %2, %4 : vector<8x3xf32>
    %6 = math.tanh %5 : vector<8x3xf32>
    %c0_5 = arith.constant 0 : index
    %c0_6 = arith.constant 0 : index
    %7 = vector.load %arg4[%c0_5, %c0_6] : memref<8x3xf32, #tpu.memory_space<vmem>>, vector<8x3xf32>
    tpu.vector_store %arg4[%c0_5, %c0_6], %6 {strides = array<i32>} : memref<8x3xf32, #tpu.memory_space<vmem>>, vector<8x3xf32>,
    return
  }
  func.func @transform_0(%arg0: i32) -> (i32, i32) {
    %c0_i32 = arith.constant 0 : i32
    %c0_i32_0 = arith.constant 0 : i32
    return %arg0, %c0_i32 : i32, i32
  }
  func.func @transform_1(%arg0: i32) -> (i32, i32) {
    %c0_i32 = arith.constant 0 : i32
    %c0_i32_0 = arith.constant 0 : i32
    %c0_i32_1 = arith.constant 0 : i32
    return %c0_i32, %c0_i32_0 : i32, i32
  }
  func.func @transform_2(%arg0: i32) -> (i32, i32) {
    %c0_i32 = arith.constant 0 : i32
    %c0_i32_0 = arith.constant 0 : i32
    %c0_i32_1 = arith.constant 0 : i32
    return %c0_i32, %c0_i32_0 : i32, i32
  }
  func.func @transform_3(%arg0: i32) -> (i32, i32) {
    %c0_i32 = arith.constant 0 : i32
    %c0_i32_0 = arith.constant 0 : i32
    return %arg0, %c0_i32 : i32, i32
  }
}

</mosaic_0001>

<llo_original>
// kernel: tpu_custom_call.1
$region0: #{tpu_custom_call.1}
  #allocation0 [shape = 'u32[]', space=smem, size = 0x4, offset = 0x4, fixed_abs, tag = 'smem constant byte address 0x4 - core index']
  #allocation1 [shape = 'u32[144,128]{1,0:T(1,128)}', space=vmem, size = 0x12000, scoped, tag = 'internal scratch']
  %s0 = inlined_call_operand.vmem [shape: f32[8,13], index: 0, kind: input, shape index: {}]
  %s1 = inlined_call_operand.vmem [shape: f32[13,3], index: 1, kind: input, shape index: {}]
  %s2 = inlined_call_operand.vmem [shape: f32[1,3], index: 2, kind: input, shape index: {}]
  %s3 = inlined_call_operand.vmem [shape: f32[8,3], index: 3, kind: output, shape index: {}]
  %s4 = sld [smem:[#allocation0]]
  $region22: #{tpu_custom_call.1} parent=0
    _
  %s6 = ssub.s32 1, %s4
  %s7 = scalar_select 0, %s6, %s4
  // Predicated region
  $region2: #{tpu_custom_call.1} parent=0 // pred_check
    _
  $region3: #{tpu_custom_call.1} parent=0 // pred_check_branch
    %9 = sbr.rel (0) target = $region5
  $region4: #{tpu_custom_call.1} parent=0 // pred_region
    _
  $region5: #{tpu_custom_call.1} parent=0 // pred_fallthru
    _
  // Predicated region
  $region6: #{tpu_custom_call.1} parent=0 // pred_check
    _
  $region7: #{tpu_custom_call.1} parent=0 // pred_check_branch
    %11 = sbr.rel (0) target = $region9
  $region8: #{tpu_custom_call.1} parent=0 // pred_region
    _
  $region9: #{tpu_custom_call.1} parent=0 // pred_fallthru
    _
  // Predicated region
  $region10: #{tpu_custom_call.1} parent=0 // pred_check
    _
  $region11: #{tpu_custom_call.1} parent=0 // pred_check_branch
    %13 = sbr.rel (0) target = $region13
  $region12: #{tpu_custom_call.1} parent=0 // pred_region
    _
  $region13: #{tpu_custom_call.1} parent=0 // pred_fallthru
    _
  %v14 = vld [vmem:[%s0] sm:$0xff]
  %v15 = vld [vmem:[%s1] sm:$0xff]
  %v16 = vld [vmem:[%s1 + $0x8] sm:$0x1f]
  %v17 = vld [vmem:[%s2] sm:$0x1]
  %v19 = vlaneseq
  %v20 = vshrl.u32 %v19, 7
  %v21 = vsub.s32 0, %v20
  %v22 = vrot.slane %v17, %v21
  %vm24 = vcmask 105472
  %v26 = vsel %vm24, %v14, 0
  %vm28 = vcmask 1044480
  %v30 = vsel %vm28, %v16, 0
  %32 = vmatprep.subr.mxu0 0.0
  %33 = vmatpush1.msra.mxu0 %v15
  %34 = vmatprep.subr.mxu0 0.0
  %35 = vmatpush1.msra.mxu0 %v30
  %36 = vmatprep.subr.mxu0 0.0
  %37 = vmatpush1.msra.mxu0 0.0
  %38 = vmatprep.subr.mxu0 0.0
  %39 = vmatpush1.msra.mxu0 0.0
  %40 = vmatprep.subr.mxu0 0.0
  %41 = vmatpush1.msra.mxu0 0.0
  %42 = vmatprep.subr.mxu0 0.0
  %43 = vmatpush1.msra.mxu0 0.0
  %44 = vmatprep.subr.mxu0 0.0
  %45 = vmatpush1.msra.mxu0 0.0
  %46 = vmatprep.subr.mxu0 0.0
  %47 = vmatpush1.msra.mxu0 0.0
  %48 = vmatprep.subr.mxu0 0.0
  %49 = vmatpush1.msra.mxu0 0.0
  %50 = vmatprep.subr.mxu0 0.0
  %51 = vmatpush1.msra.mxu0 0.0
  %52 = vmatprep.subr.mxu0 0.0
  %53 = vmatpush1.msra.mxu0 0.0
  %54 = vmatprep.subr.mxu0 0.0
  %55 = vmatpush1.msra.mxu0 0.0
  %56 = vmatprep.subr.mxu0 0.0
  %57 = vmatpush1.msra.mxu0 0.0
  %58 = vmatprep.subr.mxu0 0.0
  %59 = vmatpush1.msra.mxu0 0.0
  %60 = vmatprep.subr.mxu0 0.0
  %61 = vmatpush1.msra.mxu0 0.0
  %62 = vmatprep.subr.mxu0 0.0
  %63 = vmatpush1.msra.mxu0 0.0
  %64 = vmatprep.subr.mxu0 0.0
  %65 = vmatpush1.msra.mxu0 0.0
  %66 = vmatprep.subr.mxu0 0.0
  %67 = vmatpush1.msra.mxu0 0.0
  %68 = vmatprep.subr.mxu0 0.0
  %69 = vmatpush1.msra.mxu0 0.0
  %70 = vmatprep.subr.mxu0 0.0
  %71 = vmatpush1.msra.mxu0 0.0
  %72 = vmatprep.subr.mxu0 0.0
  %73 = vmatpush1.msra.mxu0 0.0
  %74 = vmatprep.subr.mxu0 0.0
  %75 = vmatpush1.msra.mxu0 0.0
  %76 = vmatprep.subr.mxu0 0.0
  %77 = vmatpush1.msra.mxu0 0.0
  %78 = vmatprep.subr.mxu0 0.0
  %79 = vmatpush1.msra.mxu0 0.0
  %80 = vmatprep.subr.mxu0 0.0
  %81 = vmatpush1.msra.mxu0 0.0
  %82 = vmatprep.subr.mxu0 0.0
  %83 = vmatpush1.msra.mxu0 0.0
  %84 = vmatprep.subr.mxu0 0.0
  %85 = vmatpush1.msra.mxu0 0.0
  %86 = vmatprep.subr.mxu0 0.0
  %87 = vmatpush1.msra.mxu0 0.0
  %88 = vmatprep.subr.mxu0 0.0
  %89 = vmatpush1.msra.mxu0 0.0
  %90 = vmatprep.subr.mxu0 0.0
  %91 = vmatpush1.msra.mxu0 0.0
  %92 = vmatprep.subr.mxu0 0.0
  %93 = vmatpush1.msra.mxu0 0.0
  %94 = vmatprep.subr.mxu0 0.0
  %95 = vmatpush1.msra.mxu0 0.0
  %96 = vmatprep.mubr.f32.mxu0 0.0
  %97 = vmatmul.mubr.f32.gmra.mrb[0].mxu0 %v26
  %v98 = vpop.f32.mrb[0].mxu0
  %v99 = vadd.f32 %v22, %v98
  %v100 = vpop.f32.mrb[0].mxu0
  %101 = vdwg.mxu0
  %v102 = vtanh.pop %v99
  %vm103 = vcmask 23552
  %104 = vst.msk [vmem:[%s3] sm:$0xff] %vm103, %v102
  // Predicated region
  $region14: #{tpu_custom_call.1} parent=0 // pred_check
    _
  $region15: #{tpu_custom_call.1} parent=0 // pred_check_branch
    %106 = sbr.rel (0) target = $region17
  $region16: #{tpu_custom_call.1} parent=0 // pred_region
    _
  $region17: #{tpu_custom_call.1} parent=0 // pred_fallthru
    _
  // Predicated region
  $region18: #{tpu_custom_call.1} parent=0 // pred_check
    _
  $region19: #{tpu_custom_call.1} parent=0 // pred_check_branch
    %108 = sbr.rel (0) target = $region21
  $region20: #{tpu_custom_call.1} parent=0 // pred_region
    _
  $region21: #{tpu_custom_call.1} parent=0 // pred_fallthru
    _

</llo_original>
